<compile_context>
chip_gen: v7x
topology: tpu7x:2x2x1
jax: 0.10.0
libtpu: 0.0.40
codegen_flags: <defaults>
</compile_context>

<pallas_src>
import functools

import jax
import jax.numpy as jnp
from jax.experimental import pallas as pl
from jax.experimental.pallas import tpu as pltpu


def _vq_kernel(x_ref, e_ref, he2_ref, q_ref, enc_ref, cnt_ref, *,
               n_valid, mask_pad):
    x = x_ref[...].astype(jnp.float32)                          # (TN, D)
    e = e_ref[...].astype(jnp.float32)                          # (K, D)
    tn = x.shape[0]
    k = e.shape[0]

    # Reduced distances: 0.5*||e||^2 - x @ e^T  (row-constant ||x||^2 dropped,
    # ||e||^2 precomputed once in the wrapper and passed in as (1, K)).
    xet = jax.lax.dot_general(
        x, e, (((1,), (1,)), ((), ())),
        preferred_element_type=jnp.float32)                     # (TN, K)
    dist = he2_ref[...] - xet                                   # (TN, K)

    # argmin along codes with first-occurrence tie breaking (matches torch).
    code_iota = jax.lax.broadcasted_iota(jnp.int32, (tn, k), 1)
    dmin = jnp.min(dist, axis=1, keepdims=True)
    idx = jnp.min(jnp.where(dist == dmin, code_iota, k),
                  axis=1, keepdims=True)                        # (TN, 1) int32

    # One-hot encodings: drive the MXU matmul for the quantized rows and are
    # also a kernel output (module returns them).
    enc = (code_iota == idx).astype(jnp.float32)                # (TN, K)
    q = jnp.dot(enc, e, preferred_element_type=jnp.float32)     # (TN, D)

    q_ref[...] = q.astype(q_ref.dtype)
    enc_ref[...] = enc.astype(enc_ref.dtype)

    # Per-tile code counts over valid (non-padded) rows -> perplexity in the
    # wrapper without re-reading the full (N, K) encodings from HBM.
    counts_src = enc
    if mask_pad:
        row = (pl.program_id(0) * tn
               + jax.lax.broadcasted_iota(jnp.int32, (tn, 1), 0))
        counts_src = enc * (row < n_valid).astype(jnp.float32)
    cnt_ref[...] = jnp.sum(counts_src, axis=0, keepdims=True)[None]  # (1,1,K)


def _vq_pallas(flat_x, embedding, half_e2, tile_n, n_valid):
    n_pad, d = flat_x.shape
    k, _ = embedding.shape
    num_tiles = n_pad // tile_n

    kernel = functools.partial(
        _vq_kernel, n_valid=n_valid, mask_pad=(n_pad != n_valid))

    q_flat, enc, cnt = pl.pallas_call(
        kernel,
        out_shape=(
            jax.ShapeDtypeStruct((n_pad, d), jnp.float32),
            jax.ShapeDtypeStruct((n_pad, k), jnp.float32),
            jax.ShapeDtypeStruct((num_tiles, 1, k), jnp.float32),
        ),
        grid_spec=pltpu.PrefetchScalarGridSpec(
            num_scalar_prefetch=0,
            grid=(num_tiles,),
            in_specs=[
                pl.BlockSpec((tile_n, d), lambda i: (i, 0)),
                pl.BlockSpec((k, d), lambda i: (0, 0)),   # codebook, resident
                pl.BlockSpec((1, k), lambda i: (0, 0)),   # 0.5*||e||^2, resident
            ],
            out_specs=[
                pl.BlockSpec((tile_n, d), lambda i: (i, 0)),
                pl.BlockSpec((tile_n, k), lambda i: (i, 0)),
                pl.BlockSpec((1, 1, k), lambda i: (i, 0, 0)),
            ],
        ),
        compiler_params=pltpu.CompilerParams(
            dimension_semantics=("parallel",),      # no cross-tile state
            vmem_limit_bytes=48 * 1024 * 1024),
    )(flat_x, embedding, half_e2)
    return q_flat, enc, cnt


def _choose_tile_n(n, k, d, requested):
    """Pick the largest row tile that keeps the f32 working set under ~28 MiB
    (safe on v7x's 64 MiB VMEM; far below v5e/v6e's 128 MiB)."""
    budget = 28 * 1024 * 1024

    def working_set(t):
        # Double-buffered x/q/enc tiles, resident codebook, compute temps.
        return 4 * (6 * t * d + 7 * t * k + 2 * k * d + 4 * k)

    n8 = ((n + 7) // 8) * 8
    tn = min(max(8, (requested // 8) * 8), n8)
    while tn > 8 and working_set(tn) > budget:
        tn = max(8, ((tn // 2) // 8) * 8)
    return tn


@functools.partial(jax.jit, static_argnames=("commitment_cost", "tile_n"))
def vector_quantizer_ema_forward(x_nchw, embedding, *,
                                 commitment_cost=0.25, tile_n=2048):
    """Matches VectorQuantizerLayerEMA.forward (eval mode).

    x_nchw:    (B, C, H, W), C == embeddingDim
    embedding: (numEmbeddings, embeddingDim) codebook
    Returns (loss, quantized_nchw, perplexity, encodings).
    """
    b, c, h, w = x_nchw.shape
    k, d = embedding.shape
    assert c == d, "channel dim must equal embeddingDim"

    x_nhwc = jnp.transpose(x_nchw, (0, 2, 3, 1))
    flat_x = x_nhwc.reshape(-1, d)
    n = flat_x.shape[0]

    tn = _choose_tile_n(n, k, d, tile_n)
    n_pad = ((n + tn - 1) // tn) * tn
    if n_pad != n:
        flat_x = jnp.pad(flat_x, ((0, n_pad - n), (0, 0)))

    # Hoist the codebook norm out of the kernel: 0.5*||e||^2, shape (1, K).
    emb_f32 = embedding.astype(jnp.float32)
    half_e2 = 0.5 * jnp.sum(emb_f32 * emb_f32, axis=1)[None, :]

    q_flat, encodings, counts = _vq_pallas(flat_x, embedding, half_e2, tn, n)
    if n_pad != n:
        q_flat = q_flat[:n]
        encodings = encodings[:n]

    quantized = q_flat.reshape(b, h, w, d)                      # f32, NHWC

    # e_latent_loss = mse(quantized.detach(), inputs): differentiable w.r.t.
    # the inputs (the Pallas output sits behind stop_gradient).
    x_nhwc_f32 = x_nhwc.astype(jnp.float32)
    e_latent_loss = jnp.mean(
        (jax.lax.stop_gradient(quantized) - x_nhwc_f32) ** 2)
    loss = commitment_cost * e_latent_loss

    # Straight-through estimator.
    quantized_st = x_nhwc + jax.lax.stop_gradient(
        quantized.astype(x_nhwc.dtype) - x_nhwc)

    # Perplexity from the per-tile code counts (exact match to mean(encodings)).
    avg_probs = jnp.sum(counts, axis=(0, 1)) / n
    perplexity = jnp.exp(-jnp.sum(avg_probs * jnp.log(avg_probs + 1e-10)))

    quantized_nchw = jnp.transpose(quantized_st, (0, 3, 1, 2))
    return loss, quantized_nchw, perplexity, encodings


if __name__ == "__main__":
    # Module config (synthetic, deterministic init).
    num_embeddings = 64
    embedding_dim = 32
    commitment_cost = 0.25

    key = jax.random.PRNGKey(0)
    k_emb, k_x = jax.random.split(key)

    # nn.Embedding weight ~ normal_()
    embedding = jax.random.normal(k_emb, (num_embeddings, embedding_dim),
                                  dtype=jnp.float32)

    # Input: (B, C, H, W) with C == embeddingDim.
    x = jax.random.normal(k_x, (2, embedding_dim, 8, 8), dtype=jnp.float32)

    loss, quantized, perplexity, encodings = vector_quantizer_ema_forward(
        x, embedding, commitment_cost=commitment_cost)
    jax.block_until_ready((loss, quantized, perplexity, encodings))

    # Sanity checks against a pure-JAX reference.
    x_nhwc = jnp.transpose(x, (0, 2, 3, 1))
    flat = x_nhwc.reshape(-1, embedding_dim)
    dist = (jnp.sum(flat ** 2, 1, keepdims=True)
            + jnp.sum(embedding ** 2, 1)
            - 2.0 * flat @ embedding.T)
    idx_ref = jnp.argmin(dist, axis=1)
    enc_ref = jax.nn.one_hot(idx_ref, num_embeddings, dtype=jnp.float32)
    q_ref = (enc_ref @ embedding).reshape(x_nhwc.shape)
    loss_ref = commitment_cost * jnp.mean((q_ref - x_nhwc) ** 2)
    perp_ref = jnp.exp(-jnp.sum(jnp.mean(enc_ref, 0)
                                * jnp.log(jnp.mean(enc_ref, 0) + 1e-10)))
    assert jnp.allclose(encodings, enc_ref)
    assert jnp.allclose(quantized, jnp.transpose(
        x_nhwc + (q_ref - x_nhwc), (0, 3, 1, 2)), atol=1e-5)
    assert jnp.allclose(loss, loss_ref, atol=1e-5)
    assert jnp.allclose(perplexity, perp_ref, atol=1e-4)

    print("KERNEL_OK")
</pallas_src>

<mosaic_0001>
module attributes {stable_mosaic.version = 11 : i64} {
  func.func @_vq_kernel(%arg0: i32, %arg1: memref<128x32xf32, #tpu.memory_space<vmem>>, %arg2: memref<64x32xf32, #tpu.memory_space<vmem>>, %arg3: memref<1x64xf32, #tpu.memory_space<vmem>>, %arg4: memref<128x32xf32, #tpu.memory_space<vmem>>, %arg5: memref<128x64xf32, #tpu.memory_space<vmem>>, %arg6: memref<1x1x64xf32, #tpu.memory_space<vmem>>) attributes {dimension_semantics = [#tpu.dimension_semantics<parallel>], iteration_bounds = array<i64: 1>, scalar_prefetch = 0 : i64, scratch_operands = 0 : i64, tpu.core_type = #tpu.core_type<tc>, window_params = [{transform_indices = @transform_0, window_bounds = array<i64: 128, 32>}, {pipeline_mode = #tpu.pipeline_mode<synchronous>, transform_indices = @transform_1, window_bounds = array<i64: 64, 32>}, {pipeline_mode = #tpu.pipeline_mode<synchronous>, transform_indices = @transform_2, window_bounds = array<i64: 1, 64>}, {transform_indices = @transform_3, window_bounds = array<i64: 128, 32>}, {transform_indices = @transform_4, window_bounds = array<i64: 128, 64>}, {transform_indices = @transform_5, window_bounds = array<i64: 1, 1, 64>}]} {
    %c0 = arith.constant 0 : index
    %c0_0 = arith.constant 0 : index
    %0 = vector.load %arg1[%c0, %c0_0] : memref<128x32xf32, #tpu.memory_space<vmem>>, vector<128x32xf32>
    %c0_1 = arith.constant 0 : index
    %c0_2 = arith.constant 0 : index
    %1 = vector.load %arg2[%c0_1, %c0_2] : memref<64x32xf32, #tpu.memory_space<vmem>>, vector<64x32xf32>
    %cst = arith.constant dense<0.000000e+00> : vector<128x64xf32>
    %2 = tpu.matmul %0, %1, %cst {dimension_numbers = #tpu.dot_dimension_numbers<[1], [1], [0], [0], [0, 0, 1, 0], [], []>} : vector<128x32xf32>, vector<64x32xf32>, vector<128x64xf32> -> vector<128x64xf32>
    %c0_3 = arith.constant 0 : index
    %c0_4 = arith.constant 0 : index
    %3 = vector.load %arg3[%c0_3, %c0_4] : memref<1x64xf32, #tpu.memory_space<vmem>>, vector<1x64xf32>
    %4 = vector.broadcast %3 : vector<1x64xf32> to vector<128x64xf32>
    %5 = arith.subf %4, %2 : vector<128x64xf32>
    %6 = tpu.iota {dimensions = array<i32: 1>} : vector<128x64xi32>
    %cst_5 = arith.constant dense<0x7F800000> : vector<128xf32>
    %7 = vector.multi_reduction <minimumf>, %5, %cst_5 [1] : vector<128x64xf32> to vector<128xf32>
    %8 = vector.shape_cast %7 : vector<128xf32> to vector<128x1xf32>
    %9 = vector.broadcast %8 : vector<128x1xf32> to vector<128x64xf32>
    %10 = arith.cmpf oeq, %5, %9 : vector<128x64xf32>
    %c64_i32 = arith.constant 64 : i32
    %11 = vector.broadcast %c64_i32 : i32 to vector<128x64xi32>
    %12 = arith.select %10, %6, %11 : vector<128x64xi1>, vector<128x64xi32>
    %cst_6 = arith.constant dense<2147483647> : vector<128xi32>
    %13 = vector.multi_reduction <minsi>, %12, %cst_6 [1] : vector<128x64xi32> to vector<128xi32>
    %14 = vector.shape_cast %13 : vector<128xi32> to vector<128x1xi32>
    %15 = vector.broadcast %14 : vector<128x1xi32> to vector<128x64xi32>
    %16 = arith.cmpi eq, %6, %15 : vector<128x64xi32>
    %17 = arith.extui %16 : vector<128x64xi1> to vector<128x64xi32>
    %18 = arith.sitofp %17 : vector<128x64xi32> to vector<128x64xf32>
    %cst_7 = arith.constant dense<0.000000e+00> : vector<128x32xf32>
    %19 = tpu.matmul %18, %1, %cst_7 {dimension_numbers = #tpu.dot_dimension_numbers<[1], [0], [0], [1], [0, 0, 1, 1], [], []>} : vector<128x64xf32>, vector<64x32xf32>, vector<128x32xf32> -> vector<128x32xf32>
    %c0_8 = arith.constant 0 : index
    %c0_9 = arith.constant 0 : index
    %20 = vector.load %arg4[%c0_8, %c0_9] : memref<128x32xf32, #tpu.memory_space<vmem>>, vector<128x32xf32>
    tpu.vector_store %arg4[%c0_8, %c0_9], %19 {strides = array<i32>} : memref<128x32xf32, #tpu.memory_space<vmem>>, vector<128x32xf32>,
    %c0_10 = arith.constant 0 : index
    %c0_11 = arith.constant 0 : index
    %21 = vector.load %arg5[%c0_10, %c0_11] : memref<128x64xf32, #tpu.memory_space<vmem>>, vector<128x64xf32>
    tpu.vector_store %arg5[%c0_10, %c0_11], %18 {strides = array<i32>} : memref<128x64xf32, #tpu.memory_space<vmem>>, vector<128x64xf32>,
    %cst_12 = arith.constant dense<0.000000e+00> : vector<64xf32>
    %22 = vector.multi_reduction <add>, %18, %cst_12 [0] : vector<128x64xf32> to vector<64xf32>
    %23 = vector.shape_cast %22 : vector<64xf32> to vector<1x64xf32>
    %24 = vector.shape_cast %23 : vector<1x64xf32> to vector<1x1x64xf32>
    %c0_13 = arith.constant 0 : index
    %c0_14 = arith.constant 0 : index
    %c0_15 = arith.constant 0 : index
    %25 = vector.load %arg6[%c0_13, %c0_14, %c0_15] : memref<1x1x64xf32, #tpu.memory_space<vmem>>, vector<1x1x64xf32>
    tpu.vector_store %arg6[%c0_13, %c0_14, %c0_15], %24 {strides = array<i32>} : memref<1x1x64xf32, #tpu.memory_space<vmem>>, vector<1x1x64xf32>,
    return
  }
  func.func @transform_0(%arg0: i32) -> (i32, i32) {
    %c0_i32 = arith.constant 0 : i32
    %c0_i32_0 = arith.constant 0 : i32
    return %arg0, %c0_i32 : i32, i32
  }
  func.func @transform_1(%arg0: i32) -> (i32, i32) {
    %c0_i32 = arith.constant 0 : i32
    %c0_i32_0 = arith.constant 0 : i32
    %c0_i32_1 = arith.constant 0 : i32
    return %c0_i32, %c0_i32_0 : i32, i32
  }
  func.func @transform_2(%arg0: i32) -> (i32, i32) {
    %c0_i32 = arith.constant 0 : i32
    %c0_i32_0 = arith.constant 0 : i32
    %c0_i32_1 = arith.constant 0 : i32
    return %c0_i32, %c0_i32_0 : i32, i32
  }
  func.func @transform_3(%arg0: i32) -> (i32, i32) {
    %c0_i32 = arith.constant 0 : i32
    %c0_i32_0 = arith.constant 0 : i32
    return %arg0, %c0_i32 : i32, i32
  }
  func.func @transform_4(%arg0: i32) -> (i32, i32) {
    %c0_i32 = arith.constant 0 : i32
    %c0_i32_0 = arith.constant 0 : i32
    return %arg0, %c0_i32 : i32, i32
  }
  func.func @transform_5(%arg0: i32) -> (i32, i32, i32) {
    %c0_i32 = arith.constant 0 : i32
    %c0_i32_0 = arith.constant 0 : i32
    %c0_i32_1 = arith.constant 0 : i32
    return %arg0, %c0_i32, %c0_i32_0 : i32, i32, i32
  }
}

</mosaic_0001>

<llo_original>
// kernel: vector_quantizer_ema_forward.1
$region0: #{vector_quantizer_ema_forward.1}
  #allocation0 [shape = 'u32[]', space=smem, size = 0x4, offset = 0x4, fixed_abs, tag = 'smem constant byte address 0x4 - core index']
  #allocation1 [shape = 'u32[144,128]{1,0:T(1,128)}', space=vmem, size = 0x12000, scoped, tag = 'internal scratch']
  %s0 = inlined_call_operand.vmem [shape: f32[128,32], index: 0, kind: input, shape index: {}]
  %s1 = inlined_call_operand.vmem [shape: f32[64,32], index: 1, kind: input, shape index: {}]
  %s2 = inlined_call_operand.vmem [shape: f32[1,64], index: 2, kind: input, shape index: {}]
  %s3 = inlined_call_operand.vmem [shape: f32[128,32], index: 3, kind: output, shape index: {0}]
  %s4 = inlined_call_operand.vmem [shape: f32[128,64], index: 4, kind: output, shape index: {1}]
  %s5 = inlined_call_operand.vmem [shape: f32[1,1,64], index: 5, kind: output, shape index: {2}]
  %6 = xla_tuple %s3, %s4, %s5
  %s7 = sld [smem:[#allocation0]]
  $region38: #{vector_quantizer_ema_forward.1} parent=0
    _
  %s9 = ssub.s32 1, %s7
  %s10 = scalar_select 0, %s9, %s7
  // Predicated region
  $region2: #{vector_quantizer_ema_forward.1} parent=0 // pred_check
    _
  $region3: #{vector_quantizer_ema_forward.1} parent=0 // pred_check_branch
    %12 = sbr.rel (0) target = $region5
  $region4: #{vector_quantizer_ema_forward.1} parent=0 // pred_region
    _
  $region5: #{vector_quantizer_ema_forward.1} parent=0 // pred_fallthru
    _
  // Predicated region
  $region6: #{vector_quantizer_ema_forward.1} parent=0 // pred_check
    _
  $region7: #{vector_quantizer_ema_forward.1} parent=0 // pred_check_branch
    %14 = sbr.rel (0) target = $region9
  $region8: #{vector_quantizer_ema_forward.1} parent=0 // pred_region
    _
  $region9: #{vector_quantizer_ema_forward.1} parent=0 // pred_fallthru
    _
  // Predicated region
  $region10: #{vector_quantizer_ema_forward.1} parent=0 // pred_check
    _
  $region11: #{vector_quantizer_ema_forward.1} parent=0 // pred_check_branch
    %16 = sbr.rel (0) target = $region13
  $region12: #{vector_quantizer_ema_forward.1} parent=0 // pred_region
    _
  $region13: #{vector_quantizer_ema_forward.1} parent=0 // pred_fallthru
    _
  %v17 = vld [vmem:[%s0] sm:$0xff]
  %v18 = vld [vmem:[%s0 + $0x8] sm:$0xff]
  %v19 = vld [vmem:[%s0 + $0x10] sm:$0xff]
  %v20 = vld [vmem:[%s0 + $0x18] sm:$0xff]
  %v21 = vld [vmem:[%s0 + $0x20] sm:$0xff]
  %v22 = vld [vmem:[%s0 + $0x28] sm:$0xff]
  %v23 = vld [vmem:[%s0 + $0x30] sm:$0xff]
  %v24 = vld [vmem:[%s0 + $0x38] sm:$0xff]
  %v25 = vld [vmem:[%s0 + $0x40] sm:$0xff]
  %v26 = vld [vmem:[%s0 + $0x48] sm:$0xff]
  %v27 = vld [vmem:[%s0 + $0x50] sm:$0xff]
  %v28 = vld [vmem:[%s0 + $0x58] sm:$0xff]
  %v29 = vld [vmem:[%s0 + $0x60] sm:$0xff]
  %v30 = vld [vmem:[%s0 + $0x68] sm:$0xff]
  %v31 = vld [vmem:[%s0 + $0x70] sm:$0xff]
  %v32 = vld [vmem:[%s0 + $0x78] sm:$0xff]
  %v33 = vld [vmem:[%s1] sm:$0xff]
  %v34 = vld [vmem:[%s1 + $0x8] sm:$0xff]
  %v35 = vld [vmem:[%s1 + $0x10] sm:$0xff]
  %v36 = vld [vmem:[%s1 + $0x18] sm:$0xff]
  %v37 = vld [vmem:[%s1 + $0x20] sm:$0xff]
  %v38 = vld [vmem:[%s1 + $0x28] sm:$0xff]
  %v39 = vld [vmem:[%s1 + $0x30] sm:$0xff]
  %v40 = vld [vmem:[%s1 + $0x38] sm:$0xff]
  %vm41 = vcmask 261120
  %v43 = vsel %vm41, %v17, 0
  %v46 = vsel %vm41, %v18, 0
  %v49 = vsel %vm41, %v19, 0
  %v52 = vsel %vm41, %v20, 0
  %v55 = vsel %vm41, %v21, 0
  %v58 = vsel %vm41, %v22, 0
  %v61 = vsel %vm41, %v23, 0
  %v64 = vsel %vm41, %v24, 0
  %v67 = vsel %vm41, %v25, 0
  %v70 = vsel %vm41, %v26, 0
  %v73 = vsel %vm41, %v27, 0
  %v76 = vsel %vm41, %v28, 0
  %v79 = vsel %vm41, %v29, 0
  %v82 = vsel %vm41, %v30, 0
  %v85 = vsel %vm41, %v31, 0
  %v88 = vsel %vm41, %v32, 0
  %v91 = vsel %vm41, %v33, 0
  %v94 = vsel %vm41, %v34, 0
  %v97 = vsel %vm41, %v35, 0
  %v100 = vsel %vm41, %v36, 0
  %v103 = vsel %vm41, %v37, 0
  %v106 = vsel %vm41, %v38, 0
  %v109 = vsel %vm41, %v39, 0
  %v112 = vsel %vm41, %v40, 0
  %114 = vmatprep.subr.mxu0 0.0
  %115 = vmatpush1.xpose.msra.mxu0 %v91
  %116 = vmatprep.subr.mxu0 0.0
  %117 = vmatpush1.xpose.msra.mxu0 %v94
  %118 = vmatprep.subr.mxu0 0.0
  %119 = vmatpush1.xpose.msra.mxu0 %v97
  %120 = vmatprep.subr.mxu0 0.0
  %121 = vmatpush1.xpose.msra.mxu0 %v100
  %122 = vmatprep.subr.mxu0 0.0
  %123 = vmatpush1.xpose.msra.mxu0 %v103
  %124 = vmatprep.subr.mxu0 0.0
  %125 = vmatpush1.xpose.msra.mxu0 %v106
  %126 = vmatprep.subr.mxu0 0.0
  %127 = vmatpush1.xpose.msra.mxu0 %v109
  %128 = vmatprep.subr.mxu0 0.0
  %129 = vmatpush1.xpose.msra.mxu0 %v112
  %130 = vmatprep.subr.mxu0 0.0
  %131 = vmatpush1.xpose.msra.mxu0 0.0
  %132 = vmatprep.subr.mxu0 0.0
  %133 = vmatpush1.xpose.msra.mxu0 0.0
  %134 = vmatprep.subr.mxu0 0.0
  %135 = vmatpush1.xpose.msra.mxu0 0.0
  %136 = vmatprep.subr.mxu0 0.0
  %137 = vmatpush1.xpose.msra.mxu0 0.0
  %138 = vmatprep.subr.mxu0 0.0
  %139 = vmatpush1.xpose.msra.mxu0 0.0
  %140 = vmatprep.subr.mxu0 0.0
  %141 = vmatpush1.xpose.msra.mxu0 0.0
  %142 = vmatprep.subr.mxu0 0.0
  %143 = vmatpush1.xpose.msra.mxu0 0.0
  %144 = vmatprep.subr.mxu0 0.0
  %145 = vmatpush1.xpose.msra.mxu0 0.0
  %146 = vmatprep.subr.mxu0 0.0
  %147 = vmatpush1.xpose.msra.mxu0 0.0
  %148 = vmatprep.subr.mxu0 0.0
  %149 = vmatpush1.xpose.msra.mxu0 0.0
  %150 = vmatprep.subr.mxu0 0.0
  %151 = vmatpush1.xpose.msra.mxu0 0.0
  %152 = vmatprep.subr.mxu0 0.0
  %153 = vmatpush1.xpose.msra.mxu0 0.0
  %154 = vmatprep.subr.mxu0 0.0
  %155 = vmatpush1.xpose.msra.mxu0 0.0
  %156 = vmatprep.subr.mxu0 0.0
  %157 = vmatpush1.xpose.msra.mxu0 0.0
  %158 = vmatprep.subr.mxu0 0.0
  %159 = vmatpush1.xpose.msra.mxu0 0.0
  %160 = vmatprep.subr.mxu0 0.0
  %161 = vmatpush1.xpose.msra.mxu0 0.0
  %162 = vmatprep.subr.mxu0 0.0
  %163 = vmatpush1.xpose.msra.mxu0 0.0
  %164 = vmatprep.subr.mxu0 0.0
  %165 = vmatpush1.xpose.msra.mxu0 0.0
  %166 = vmatprep.subr.mxu0 0.0
  %167 = vmatpush1.xpose.msra.mxu0 0.0
  %168 = vmatprep.subr.mxu0 0.0
  %169 = vmatpush1.xpose.msra.mxu0 0.0
  %170 = vmatprep.subr.mxu0 0.0
  %171 = vmatpush1.xpose.msra.mxu0 0.0
  %172 = vmatprep.subr.mxu0 0.0
  %173 = vmatpush1.xpose.msra.mxu0 0.0
  %174 = vmatprep.subr.mxu0 0.0
  %175 = vmatpush1.xpose.msra.mxu0 0.0
  %176 = vmatprep.subr.mxu0 0.0
  %177 = vmatpush1.xpose.msra.mxu0 0.0
  %178 = vmatprep.mubr.f32.mxu0 0.0
  %179 = vmatmul.mubr.f32.gmra.mrb[0].mxu0 %v43
  %v180 = vpop.f32.mrb[0].mxu0
  %v181 = vadd.f32 0.0, %v180
  %v182 = vpop.f32.mrb[0].mxu0
  %183 = vmatprep.mubr.f32.mxu0 0.0
  %184 = vmatmul.mubr.f32.gmra.mrb[0].mxu0 %v46
  %v185 = vpop.f32.mrb[0].mxu0
  %v186 = vadd.f32 0.0, %v185
  %v187 = vpop.f32.mrb[0].mxu0
  %188 = vmatprep.mubr.f32.mxu0 0.0
  %189 = vmatmul.mubr.f32.gmra.mrb[0].mxu0 %v49
  %v190 = vpop.f32.mrb[0].mxu0
  %v191 = vadd.f32 0.0, %v190
  %v192 = vpop.f32.mrb[0].mxu0
  %193 = vmatprep.mubr.f32.mxu0 0.0
  %194 = vmatmul.mubr.f32.gmra.mrb[0].mxu0 %v52
  %v195 = vpop.f32.mrb[0].mxu0
  %v196 = vadd.f32 0.0, %v195
  %v197 = vpop.f32.mrb[0].mxu0
  %198 = vmatprep.mubr.f32.mxu0 0.0
  %199 = vmatmul.mubr.f32.gmra.mrb[0].mxu0 %v55
  %v200 = vpop.f32.mrb[0].mxu0
  %v201 = vadd.f32 0.0, %v200
  %v202 = vpop.f32.mrb[0].mxu0
  %203 = vmatprep.mubr.f32.mxu0 0.0
  %204 = vmatmul.mubr.f32.gmra.mrb[0].mxu0 %v58
  %v205 = vpop.f32.mrb[0].mxu0
  %v206 = vadd.f32 0.0, %v205
  %v207 = vpop.f32.mrb[0].mxu0
  %208 = vmatprep.mubr.f32.mxu0 0.0
  %209 = vmatmul.mubr.f32.gmra.mrb[0].mxu0 %v61
  %v210 = vpop.f32.mrb[0].mxu0
  %v211 = vadd.f32 0.0, %v210
  %v212 = vpop.f32.mrb[0].mxu0
  %213 = vmatprep.mubr.f32.mxu0 0.0
  %214 = vmatmul.mubr.f32.gmra.mrb[0].mxu0 %v64
  %v215 = vpop.f32.mrb[0].mxu0
  %v216 = vadd.f32 0.0, %v215
  %v217 = vpop.f32.mrb[0].mxu0
  %218 = vmatprep.mubr.f32.mxu0 0.0
  %219 = vmatmul.mubr.f32.gmra.mrb[0].mxu0 %v67
  %v220 = vpop.f32.mrb[0].mxu0
  %v221 = vadd.f32 0.0, %v220
  %v222 = vpop.f32.mrb[0].mxu0
  %223 = vmatprep.mubr.f32.mxu0 0.0
  %224 = vmatmul.mubr.f32.gmra.mrb[0].mxu0 %v70
  %v225 = vpop.f32.mrb[0].mxu0
  %v226 = vadd.f32 0.0, %v225
  %v227 = vpop.f32.mrb[0].mxu0
  %228 = vmatprep.mubr.f32.mxu0 0.0
  %229 = vmatmul.mubr.f32.gmra.mrb[0].mxu0 %v73
  %v230 = vpop.f32.mrb[0].mxu0
  %v231 = vadd.f32 0.0, %v230
  %v232 = vpop.f32.mrb[0].mxu0
  %233 = vmatprep.mubr.f32.mxu0 0.0
  %234 = vmatmul.mubr.f32.gmra.mrb[0].mxu0 %v76
  %v235 = vpop.f32.mrb[0].mxu0
  %v236 = vadd.f32 0.0, %v235
  %v237 = vpop.f32.mrb[0].mxu0
  %238 = vmatprep.mubr.f32.mxu0 0.0
  %239 = vmatmul.mubr.f32.gmra.mrb[0].mxu0 %v79
  %v240 = vpop.f32.mrb[0].mxu0
  %v241 = vadd.f32 0.0, %v240
  %v242 = vpop.f32.mrb[0].mxu0
  %243 = vmatprep.mubr.f32.mxu0 0.0
  %244 = vmatmul.mubr.f32.gmra.mrb[0].mxu0 %v82
  %v245 = vpop.f32.mrb[0].mxu0
  %v246 = vadd.f32 0.0, %v245
  %v247 = vpop.f32.mrb[0].mxu0
  %248 = vmatprep.mubr.f32.mxu0 0.0
  %249 = vmatmul.mubr.f32.gmra.mrb[0].mxu0 %v85
  %v250 = vpop.f32.mrb[0].mxu0
  %v251 = vadd.f32 0.0, %v250
  %v252 = vpop.f32.mrb[0].mxu0
  %253 = vmatprep.mubr.f32.mxu0 0.0
  %254 = vmatmul.mubr.f32.gmra.mrb[0].mxu0 %v88
  %v255 = vpop.f32.mrb[0].mxu0
  %v256 = vadd.f32 0.0, %v255
  %v257 = vpop.f32.mrb[0].mxu0
  %258 = vdwg.mxu0
  %v259 = vld [vmem:[%s2] sm:$0x1]
  %v261 = vlaneseq
  %v262 = vshrl.u32 %v261, 7
  %v263 = vsub.s32 0, %v262
  %v264 = vrot.slane %v259, %v263
  %v266 = vsub.f32 %v264, %v181
  %v267 = vsub.f32 %v264, %v186
  %v268 = vsub.f32 %v264, %v191
  %v269 = vsub.f32 %v264, %v196
  %v270 = vsub.f32 %v264, %v201
  %v271 = vsub.f32 %v264, %v206
  %v272 = vsub.f32 %v264, %v211
  %v273 = vsub.f32 %v264, %v216
  %v274 = vsub.f32 %v264, %v221
  %v275 = vsub.f32 %v264, %v226
  %v276 = vsub.f32 %v264, %v231
  %v277 = vsub.f32 %v264, %v236
  %v278 = vsub.f32 %v264, %v241
  %v279 = vsub.f32 %v264, %v246
  %v280 = vsub.f32 %v264, %v251
  %v281 = vsub.f32 %v264, %v256
  %v282 = vlaneseq
  %v283 = vand.u32 %v282, 127
  %vm284 = vcmask 523264
  %v285 = vsel %vm284, %v266, inf
  %286 = vmin.xlane.f32.xlu0 %v285
  %v287 = vpop.xlane.xlu0 %286
  %v288 = vsel %vm284, %v267, inf
  %289 = vmin.xlane.f32.xlu0 %v288
  %v290 = vpop.xlane.xlu0 %289
  %v291 = vsel %vm284, %v268, inf
  %292 = vmin.xlane.f32.xlu0 %v291
  %v293 = vpop.xlane.xlu0 %292
  %v294 = vsel %vm284, %v269, inf
  %295 = vmin.xlane.f32.xlu0 %v294
  %v296 = vpop.xlane.xlu0 %295
  %v297 = vsel %vm284, %v270, inf
  %298 = vmin.xlane.f32.xlu0 %v297
  %v299 = vpop.xlane.xlu0 %298
  %v300 = vsel %vm284, %v271, inf
  %301 = vmin.xlane.f32.xlu0 %v300
  %v302 = vpop.xlane.xlu0 %301
  %v303 = vsel %vm284, %v272, inf
  %304 = vmin.xlane.f32.xlu0 %v303
  %v305 = vpop.xlane.xlu0 %304
  %v306 = vsel %vm284, %v273, inf
  %307 = vmin.xlane.f32.xlu0 %v306
  %v308 = vpop.xlane.xlu0 %307
  %v309 = vsel %vm284, %v274, inf
  %310 = vmin.xlane.f32.xlu0 %v309
  %v311 = vpop.xlane.xlu0 %310
  %v312 = vsel %vm284, %v275, inf
  %313 = vmin.xlane.f32.xlu0 %v312
  %v314 = vpop.xlane.xlu0 %313
  %v315 = vsel %vm284, %v276, inf
  %316 = vmin.xlane.f32.xlu0 %v315
  %v317 = vpop.xlane.xlu0 %316
  %v318 = vsel %vm284, %v277, inf
  %319 = vmin.xlane.f32.xlu0 %v318
  %v320 = vpop.xlane.xlu0 %319
  %v321 = vsel %vm284, %v278, inf
  %322 = vmin.xlane.f32.xlu0 %v321
  %v323 = vpop.xlane.xlu0 %322
  %v324 = vsel %vm284, %v279, inf
  %325 = vmin.xlane.f32.xlu0 %v324
  %v326 = vpop.xlane.xlu0 %325
  %v327 = vsel %vm284, %v280, inf
  %328 = vmin.xlane.f32.xlu0 %v327
  %v329 = vpop.xlane.xlu0 %328
  %v330 = vsel %vm284, %v281, inf
  %331 = vmin.xlane.f32.xlu0 %v330
  %v332 = vpop.xlane.xlu0 %331
  %vm333 = vcmp.eq.f32.partialorder %v266, %v287
  %vm334 = vcmp.eq.f32.partialorder %v267, %v290
  %vm335 = vcmp.eq.f32.partialorder %v268, %v293
  %vm336 = vcmp.eq.f32.partialorder %v269, %v296
  %vm337 = vcmp.eq.f32.partialorder %v270, %v299
  %vm338 = vcmp.eq.f32.partialorder %v271, %v302
  %vm339 = vcmp.eq.f32.partialorder %v272, %v305
  %vm340 = vcmp.eq.f32.partialorder %v273, %v308
  %vm341 = vcmp.eq.f32.partialorder %v274, %v311
  %vm342 = vcmp.eq.f32.partialorder %v275, %v314
  %vm343 = vcmp.eq.f32.partialorder %v276, %v317
  %vm344 = vcmp.eq.f32.partialorder %v277, %v320
  %vm345 = vcmp.eq.f32.partialorder %v278, %v323
  %vm346 = vcmp.eq.f32.partialorder %v279, %v326
  %vm347 = vcmp.eq.f32.partialorder %v280, %v329
  %vm348 = vcmp.eq.f32.partialorder %v281, %v332
  %v349 = vsel %vm333, %v283, 64
  %v350 = vsel %vm334, %v283, 64
  %v351 = vsel %vm335, %v283, 64
  %v352 = vsel %vm336, %v283, 64
  %v353 = vsel %vm337, %v283, 64
  %v354 = vsel %vm338, %v283, 64
  %v355 = vsel %vm339, %v283, 64
  %v356 = vsel %vm340, %v283, 64
  %v357 = vsel %vm341, %v283, 64
  %v358 = vsel %vm342, %v283, 64
  %v359 = vsel %vm343, %v283, 64
  %v360 = vsel %vm344, %v283, 64
  %v361 = vsel %vm345, %v283, 64
  %v362 = vsel %vm346, %v283, 64
  %v363 = vsel %vm347, %v283, 64
  %v364 = vsel %vm348, %v283, 64
  %v365 = vsel %vm284, %v349, 2147483647
  %v366 = vand.u32 %v365, 65535
  %v367 = vshra.s32 %v365, 16
  %v368 = vcvt.s32.f32 %v366
  %v369 = vcvt.s32.f32 %v367
  %370 = vmin.xlane.f32.xlu0 %v369
  %v371 = vpop.xlane.xlu0 %370
  %vm372 = vcmp.eq.f32.partialorder %v369, %v371
  %v373 = vsel %vm372, %v368, inf
  %374 = vmin.xlane.f32.xlu0 %v373
  %v375 = vpop.xlane.xlu0 %374
  %v376 = vcvt.f32.s32 %v375
  %v377 = vcvt.f32.s32 %v371
  %v378 = vshll.u32 %v377, 16
  %v379 = vadd.s32 %v378, %v376
  %v380 = vsel %vm284, %v350, 2147483647
  %v381 = vand.u32 %v380, 65535
  %v382 = vshra.s32 %v380, 16
  %v383 = vcvt.s32.f32 %v381
  %v384 = vcvt.s32.f32 %v382
  %385 = vmin.xlane.f32.xlu0 %v384
  %v386 = vpop.xlane.xlu0 %385
  %vm387 = vcmp.eq.f32.partialorder %v384, %v386
  %v388 = vsel %vm387, %v383, inf
  %389 = vmin.xlane.f32.xlu0 %v388
  %v390 = vpop.xlane.xlu0 %389
  %v391 = vcvt.f32.s32 %v390
  %v392 = vcvt.f32.s32 %v386
  %v393 = vshll.u32 %v392, 16
  %v394 = vadd.s32 %v393, %v391
  %v395 = vsel %vm284, %v351, 2147483647
  %v396 = vand.u32 %v395, 65535
  %v397 = vshra.s32 %v395, 16
  %v398 = vcvt.s32.f32 %v396
  %v399 = vcvt.s32.f32 %v397
  %400 = vmin.xlane.f32.xlu0 %v399
  %v401 = vpop.xlane.xlu0 %400
  %vm402 = vcmp.eq.f32.partialorder %v399, %v401
  %v403 = vsel %vm402, %v398, inf
  %404 = vmin.xlane.f32.xlu0 %v403
  %v405 = vpop.xlane.xlu0 %404
  %v406 = vcvt.f32.s32 %v405
  %v407 = vcvt.f32.s32 %v401
  %v408 = vshll.u32 %v407, 16
  %v409 = vadd.s32 %v408, %v406
  %v410 = vsel %vm284, %v352, 2147483647
  %v411 = vand.u32 %v410, 65535
  %v412 = vshra.s32 %v410, 16
  %v413 = vcvt.s32.f32 %v411
  %v414 = vcvt.s32.f32 %v412
  %415 = vmin.xlane.f32.xlu0 %v414
  %v416 = vpop.xlane.xlu0 %415
  %vm417 = vcmp.eq.f32.partialorder %v414, %v416
  %v418 = vsel %vm417, %v413, inf
  %419 = vmin.xlane.f32.xlu0 %v418
  %v420 = vpop.xlane.xlu0 %419
  %v421 = vcvt.f32.s32 %v420
  %v422 = vcvt.f32.s32 %v416
  %v423 = vshll.u32 %v422, 16
  %v424 = vadd.s32 %v423, %v421
  %v425 = vsel %vm284, %v353, 2147483647
  %v426 = vand.u32 %v425, 65535
  %v427 = vshra.s32 %v425, 16
  %v428 = vcvt.s32.f32 %v426
  %v429 = vcvt.s32.f32 %v427
  %430 = vmin.xlane.f32.xlu0 %v429
  %v431 = vpop.xlane.xlu0 %430
  %vm432 = vcmp.eq.f32.partialorder %v429, %v431
  %v433 = vsel %vm432, %v428, inf
  %434 = vmin.xlane.f32.xlu0 %v433
  %v435 = vpop.xlane.xlu0 %434
  %v436 = vcvt.f32.s32 %v435
  %v437 = vcvt.f32.s32 %v431
  %v438 = vshll.u32 %v437, 16
  %v439 = vadd.s32 %v438, %v436
  %v440 = vsel %vm284, %v354, 2147483647
  %v441 = vand.u32 %v440, 65535
  %v442 = vshra.s32 %v440, 16
  %v443 = vcvt.s32.f32 %v441
  %v444 = vcvt.s32.f32 %v442
  %445 = vmin.xlane.f32.xlu0 %v444
  %v446 = vpop.xlane.xlu0 %445
  %vm447 = vcmp.eq.f32.partialorder %v444, %v446
  %v448 = vsel %vm447, %v443, inf
  %449 = vmin.xlane.f32.xlu0 %v448
  %v450 = vpop.xlane.xlu0 %449
  %v451 = vcvt.f32.s32 %v450
  %v452 = vcvt.f32.s32 %v446
  %v453 = vshll.u32 %v452, 16
  %v454 = vadd.s32 %v453, %v451
  %v455 = vsel %vm284, %v355, 2147483647
  %v456 = vand.u32 %v455, 65535
  %v457 = vshra.s32 %v455, 16
  %v458 = vcvt.s32.f32 %v456
  %v459 = vcvt.s32.f32 %v457
  %460 = vmin.xlane.f32.xlu0 %v459
  %v461 = vpop.xlane.xlu0 %460
  %vm462 = vcmp.eq.f32.partialorder %v459, %v461
  %v463 = vsel %vm462, %v458, inf
  %464 = vmin.xlane.f32.xlu0 %v463
  %v465 = vpop.xlane.xlu0 %464
  %v466 = vcvt.f32.s32 %v465
  %v467 = vcvt.f32.s32 %v461
  %v468 = vshll.u32 %v467, 16
  %v469 = vadd.s32 %v468, %v466
  %v470 = vsel %vm284, %v356, 2147483647
  %v471 = vand.u32 %v470, 65535
  %v472 = vshra.s32 %v470, 16
  %v473 = vcvt.s32.f32 %v471
  %v474 = vcvt.s32.f32 %v472
  %475 = vmin.xlane.f32.xlu0 %v474
  %v476 = vpop.xlane.xlu0 %475
  %vm477 = vcmp.eq.f32.partialorder %v474, %v476
  %v478 = vsel %vm477, %v473, inf
  %479 = vmin.xlane.f32.xlu0 %v478
  %v480 = vpop.xlane.xlu0 %479
  %v481 = vcvt.f32.s32 %v480
  %v482 = vcvt.f32.s32 %v476
  %v483 = vshll.u32 %v482, 16
  %v484 = vadd.s32 %v483, %v481
  %v485 = vsel %vm284, %v357, 2147483647
  %v486 = vand.u32 %v485, 65535
  %v487 = vshra.s32 %v485, 16
  %v488 = vcvt.s32.f32 %v486
  %v489 = vcvt.s32.f32 %v487
  %490 = vmin.xlane.f32.xlu0 %v489
  %v491 = vpop.xlane.xlu0 %490
  %vm492 = vcmp.eq.f32.partialorder %v489, %v491
  %v493 = vsel %vm492, %v488, inf
  %494 = vmin.xlane.f32.xlu0 %v493
  %v495 = vpop.xlane.xlu0 %494
  %v496 = vcvt.f32.s32 %v495
  %v497 = vcvt.f32.s32 %v491
  %v498 = vshll.u32 %v497, 16
  %v499 = vadd.s32 %v498, %v496
  %v500 = vsel %vm284, %v358, 2147483647
  %v501 = vand.u32 %v500, 65535
  %v502 = vshra.s32 %v500, 16
  %v503 = vcvt.s32.f32 %v501
  %v504 = vcvt.s32.f32 %v502
  %505 = vmin.xlane.f32.xlu0 %v504
  %v506 = vpop.xlane.xlu0 %505
  %vm507 = vcmp.eq.f32.partialorder %v504, %v506
  %v508 = vsel %vm507, %v503, inf
  %509 = vmin.xlane.f32.xlu0 %v508
  %v510 = vpop.xlane.xlu0 %509
  %v511 = vcvt.f32.s32 %v510
  %v512 = vcvt.f32.s32 %v506
  %v513 = vshll.u32 %v512, 16
  %v514 = vadd.s32 %v513, %v511
  %v515 = vsel %vm284, %v359, 2147483647
  %v516 = vand.u32 %v515, 65535
  %v517 = vshra.s32 %v515, 16
  %v518 = vcvt.s32.f32 %v516
  %v519 = vcvt.s32.f32 %v517
  %520 = vmin.xlane.f32.xlu0 %v519
  %v521 = vpop.xlane.xlu0 %520
  %vm522 = vcmp.eq.f32.partialorder %v519, %v521
  %v523 = vsel %vm522, %v518, inf
  %524 = vmin.xlane.f32.xlu0 %v523
  %v525 = vpop.xlane.xlu0 %524
  %v526 = vcvt.f32.s32 %v525
  %v527 = vcvt.f32.s32 %v521
  %v528 = vshll.u32 %v527, 16
  %v529 = vadd.s32 %v528, %v526
  %v530 = vsel %vm284, %v360, 2147483647
  %v531 = vand.u32 %v530, 65535
  %v532 = vshra.s32 %v530, 16
  %v533 = vcvt.s32.f32 %v531
  %v534 = vcvt.s32.f32 %v532
  %535 = vmin.xlane.f32.xlu0 %v534
  %v536 = vpop.xlane.xlu0 %535
  %vm537 = vcmp.eq.f32.partialorder %v534, %v536
  %v538 = vsel %vm537, %v533, inf
  %539 = vmin.xlane.f32.xlu0 %v538
  %v540 = vpop.xlane.xlu0 %539
  %v541 = vcvt.f32.s32 %v540
  %v542 = vcvt.f32.s32 %v536
  %v543 = vshll.u32 %v542, 16
  %v544 = vadd.s32 %v543, %v541
  %v545 = vsel %vm284, %v361, 2147483647
  %v546 = vand.u32 %v545, 65535
  %v547 = vshra.s32 %v545, 16
  %v548 = vcvt.s32.f32 %v546
  %v549 = vcvt.s32.f32 %v547
  %550 = vmin.xlane.f32.xlu0 %v549
  %v551 = vpop.xlane.xlu0 %550
  %vm552 = vcmp.eq.f32.partialorder %v549, %v551
  %v553 = vsel %vm552, %v548, inf
  %554 = vmin.xlane.f32.xlu0 %v553
  %v555 = vpop.xlane.xlu0 %554
  %v556 = vcvt.f32.s32 %v555
  %v557 = vcvt.f32.s32 %v551
  %v558 = vshll.u32 %v557, 16
  %v559 = vadd.s32 %v558, %v556
  %v560 = vsel %vm284, %v362, 2147483647
  %v561 = vand.u32 %v560, 65535
  %v562 = vshra.s32 %v560, 16
  %v563 = vcvt.s32.f32 %v561
  %v564 = vcvt.s32.f32 %v562
  %565 = vmin.xlane.f32.xlu0 %v564
  %v566 = vpop.xlane.xlu0 %565
  %vm567 = vcmp.eq.f32.partialorder %v564, %v566
  %v568 = vsel %vm567, %v563, inf
  %569 = vmin.xlane.f32.xlu0 %v568
  %v570 = vpop.xlane.xlu0 %569
  %v571 = vcvt.f32.s32 %v570
  %v572 = vcvt.f32.s32 %v566
  %v573 = vshll.u32 %v572, 16
  %v574 = vadd.s32 %v573, %v571
  %v575 = vsel %vm284, %v363, 2147483647
  %v576 = vand.u32 %v575, 65535
  %v577 = vshra.s32 %v575, 16
  %v578 = vcvt.s32.f32 %v576
  %v579 = vcvt.s32.f32 %v577
  %580 = vmin.xlane.f32.xlu0 %v579
  %v581 = vpop.xlane.xlu0 %580
  %vm582 = vcmp.eq.f32.partialorder %v579, %v581
  %v583 = vsel %vm582, %v578, inf
  %584 = vmin.xlane.f32.xlu0 %v583
  %v585 = vpop.xlane.xlu0 %584
  %v586 = vcvt.f32.s32 %v585
  %v587 = vcvt.f32.s32 %v581
  %v588 = vshll.u32 %v587, 16
  %v589 = vadd.s32 %v588, %v586
  %v590 = vsel %vm284, %v364, 2147483647
  %v591 = vand.u32 %v590, 65535
  %v592 = vshra.s32 %v590, 16
  %v593 = vcvt.s32.f32 %v591
  %v594 = vcvt.s32.f32 %v592
  %595 = vmin.xlane.f32.xlu0 %v594
  %v596 = vpop.xlane.xlu0 %595
  %vm597 = vcmp.eq.f32.partialorder %v594, %v596
  %v598 = vsel %vm597, %v593, inf
  %599 = vmin.xlane.f32.xlu0 %v598
  %v600 = vpop.xlane.xlu0 %599
  %v601 = vcvt.f32.s32 %v600
  %v602 = vcvt.f32.s32 %v596
  %v603 = vshll.u32 %v602, 16
  %v604 = vadd.s32 %v603, %v601
  %vm605 = vcmp.eq.s32.totalorder %v283, %v379
  %vm606 = vcmp.eq.s32.totalorder %v283, %v394
  %vm607 = vcmp.eq.s32.totalorder %v283, %v409
  %vm608 = vcmp.eq.s32.totalorder %v283, %v424
  %vm609 = vcmp.eq.s32.totalorder %v283, %v439
  %vm610 = vcmp.eq.s32.totalorder %v283, %v454
  %vm611 = vcmp.eq.s32.totalorder %v283, %v469
  %vm612 = vcmp.eq.s32.totalorder %v283, %v484
  %vm613 = vcmp.eq.s32.totalorder %v283, %v499
  %vm614 = vcmp.eq.s32.totalorder %v283, %v514
  %vm615 = vcmp.eq.s32.totalorder %v283, %v529
  %vm616 = vcmp.eq.s32.totalorder %v283, %v544
  %vm617 = vcmp.eq.s32.totalorder %v283, %v559
  %vm618 = vcmp.eq.s32.totalorder %v283, %v574
  %vm619 = vcmp.eq.s32.totalorder %v283, %v589
  %vm620 = vcmp.eq.s32.totalorder %v283, %v604
  %v621 = vsel %vm605, 1, 0
  %v622 = vsel %vm606, 1, 0
  %v623 = vsel %vm607, 1, 0
  %v624 = vsel %vm608, 1, 0
  %v625 = vsel %vm609, 1, 0
  %v626 = vsel %vm610, 1, 0
  %v627 = vsel %vm611, 1, 0
  %v628 = vsel %vm612, 1, 0
  %v629 = vsel %vm613, 1, 0
  %v630 = vsel %vm614, 1, 0
  %v631 = vsel %vm615, 1, 0
  %v632 = vsel %vm616, 1, 0
  %v633 = vsel %vm617, 1, 0
  %v634 = vsel %vm618, 1, 0
  %v635 = vsel %vm619, 1, 0
  %v636 = vsel %vm620, 1, 0
  %v637 = vcvt.s32.f32 %v621
  %v638 = vcvt.s32.f32 %v622
  %v639 = vcvt.s32.f32 %v623
  %v640 = vcvt.s32.f32 %v624
  %v641 = vcvt.s32.f32 %v625
  %v642 = vcvt.s32.f32 %v626
  %v643 = vcvt.s32.f32 %v627
  %v644 = vcvt.s32.f32 %v628
  %v645 = vcvt.s32.f32 %v629
  %v646 = vcvt.s32.f32 %v630
  %v647 = vcvt.s32.f32 %v631
  %v648 = vcvt.s32.f32 %v632
  %v649 = vcvt.s32.f32 %v633
  %v650 = vcvt.s32.f32 %v634
  %v651 = vcvt.s32.f32 %v635
  %v652 = vcvt.s32.f32 %v636
  %v654 = vsel %vm284, %v637, 0
  %v657 = vsel %vm284, %v638, 0
  %v660 = vsel %vm284, %v639, 0
  %v663 = vsel %vm284, %v640, 0
  %v666 = vsel %vm284, %v641, 0
  %v669 = vsel %vm284, %v642, 0
  %v672 = vsel %vm284, %v643, 0
  %v675 = vsel %vm284, %v644, 0
  %v678 = vsel %vm284, %v645, 0
  %v681 = vsel %vm284, %v646, 0
  %v684 = vsel %vm284, %v647, 0
  %v687 = vsel %vm284, %v648, 0
  %v690 = vsel %vm284, %v649, 0
  %v693 = vsel %vm284, %v650, 0
  %v696 = vsel %vm284, %v651, 0
  %v699 = vsel %vm284, %v652, 0
  %701 = vmatprep.subr.mxu0 0.0
  %702 = vmatpush1.msra.mxu0 %v33
  %703 = vmatprep.subr.mxu0 0.0
  %704 = vmatpush1.msra.mxu0 %v34
  %705 = vmatprep.subr.mxu0 0.0
  %706 = vmatpush1.msra.mxu0 %v35
  %707 = vmatprep.subr.mxu0 0.0
  %708 = vmatpush1.msra.mxu0 %v36
  %709 = vmatprep.subr.mxu0 0.0
  %710 = vmatpush1.msra.mxu0 %v37
  %711 = vmatprep.subr.mxu0 0.0
  %712 = vmatpush1.msra.mxu0 %v38
  %713 = vmatprep.subr.mxu0 0.0
  %714 = vmatpush1.msra.mxu0 %v39
  %715 = vmatprep.subr.mxu0 0.0
  %716 = vmatpush1.msra.mxu0 %v40
  %717 = vmatprep.subr.mxu0 0.0
  %718 = vmatpush1.msra.mxu0 0.0
  %719 = vmatprep.subr.mxu0 0.0
  %720 = vmatpush1.msra.mxu0 0.0
  %721 = vmatprep.subr.mxu0 0.0
  %722 = vmatpush1.msra.mxu0 0.0
  %723 = vmatprep.subr.mxu0 0.0
  %724 = vmatpush1.msra.mxu0 0.0
  %725 = vmatprep.subr.mxu0 0.0
  %726 = vmatpush1.msra.mxu0 0.0
  %727 = vmatprep.subr.mxu0 0.0
  %728 = vmatpush1.msra.mxu0 0.0
  %729 = vmatprep.subr.mxu0 0.0
  %730 = vmatpush1.msra.mxu0 0.0
  %731 = vmatprep.subr.mxu0 0.0
  %732 = vmatpush1.msra.mxu0 0.0
  %733 = vmatprep.subr.mxu0 0.0
  %734 = vmatpush1.msra.mxu0 0.0
  %735 = vmatprep.subr.mxu0 0.0
  %736 = vmatpush1.msra.mxu0 0.0
  %737 = vmatprep.subr.mxu0 0.0
  %738 = vmatpush1.msra.mxu0 0.0
  %739 = vmatprep.subr.mxu0 0.0
  %740 = vmatpush1.msra.mxu0 0.0
  %741 = vmatprep.subr.mxu0 0.0
  %742 = vmatpush1.msra.mxu0 0.0
  %743 = vmatprep.subr.mxu0 0.0
  %744 = vmatpush1.msra.mxu0 0.0
  %745 = vmatprep.subr.mxu0 0.0
  %746 = vmatpush1.msra.mxu0 0.0
  %747 = vmatprep.subr.mxu0 0.0
  %748 = vmatpush1.msra.mxu0 0.0
  %749 = vmatprep.subr.mxu0 0.0
  %750 = vmatpush1.msra.mxu0 0.0
  %751 = vmatprep.subr.mxu0 0.0
  %752 = vmatpush1.msra.mxu0 0.0
  %753 = vmatprep.subr.mxu0 0.0
  %754 = vmatpush1.msra.mxu0 0.0
  %755 = vmatprep.subr.mxu0 0.0
  %756 = vmatpush1.msra.mxu0 0.0
  %757 = vmatprep.subr.mxu0 0.0
  %758 = vmatpush1.msra.mxu0 0.0
  %759 = vmatprep.subr.mxu0 0.0
  %760 = vmatpush1.msra.mxu0 0.0
  %761 = vmatprep.subr.mxu0 0.0
  %762 = vmatpush1.msra.mxu0 0.0
  %763 = vmatprep.subr.mxu0 0.0
  %764 = vmatpush1.msra.mxu0 0.0
  %765 = vmatprep.mubr.f32.mxu0 0.0
  %766 = vmatmul.mubr.f32.gmra.mrb[0].mxu0 %v654
  %v767 = vpop.f32.mrb[0].mxu0
  %v768 = vadd.f32 0.0, %v767
  %v769 = vpop.f32.mrb[0].mxu0
  %770 = vmatprep.mubr.f32.mxu0 0.0
  %771 = vmatmul.mubr.f32.gmra.mrb[0].mxu0 %v657
  %v772 = vpop.f32.mrb[0].mxu0
  %v773 = vadd.f32 0.0, %v772
  %v774 = vpop.f32.mrb[0].mxu0
  %775 = vmatprep.mubr.f32.mxu0 0.0
  %776 = vmatmul.mubr.f32.gmra.mrb[0].mxu0 %v660
  %v777 = vpop.f32.mrb[0].mxu0
  %v778 = vadd.f32 0.0, %v777
  %v779 = vpop.f32.mrb[0].mxu0
  %780 = vmatprep.mubr.f32.mxu0 0.0
  %781 = vmatmul.mubr.f32.gmra.mrb[0].mxu0 %v663
  %v782 = vpop.f32.mrb[0].mxu0
  %v783 = vadd.f32 0.0, %v782
  %v784 = vpop.f32.mrb[0].mxu0
  %785 = vmatprep.mubr.f32.mxu0 0.0
  %786 = vmatmul.mubr.f32.gmra.mrb[0].mxu0 %v666
  %v787 = vpop.f32.mrb[0].mxu0
  %v788 = vadd.f32 0.0, %v787
  %v789 = vpop.f32.mrb[0].mxu0
  %790 = vmatprep.mubr.f32.mxu0 0.0
  %791 = vmatmul.mubr.f32.gmra.mrb[0].mxu0 %v669
  %v792 = vpop.f32.mrb[0].mxu0
  %v793 = vadd.f32 0.0, %v792
  %v794 = vpop.f32.mrb[0].mxu0
  %795 = vmatprep.mubr.f32.mxu0 0.0
  %796 = vmatmul.mubr.f32.gmra.mrb[0].mxu0 %v672
  %v797 = vpop.f32.mrb[0].mxu0
  %v798 = vadd.f32 0.0, %v797
  %v799 = vpop.f32.mrb[0].mxu0
  %800 = vmatprep.mubr.f32.mxu0 0.0
  %801 = vmatmul.mubr.f32.gmra.mrb[0].mxu0 %v675
  %v802 = vpop.f32.mrb[0].mxu0
  %v803 = vadd.f32 0.0, %v802
  %v804 = vpop.f32.mrb[0].mxu0
  %805 = vmatprep.mubr.f32.mxu0 0.0
  %806 = vmatmul.mubr.f32.gmra.mrb[0].mxu0 %v678
  %v807 = vpop.f32.mrb[0].mxu0
  %v808 = vadd.f32 0.0, %v807
  %v809 = vpop.f32.mrb[0].mxu0
  %810 = vmatprep.mubr.f32.mxu0 0.0
  %811 = vmatmul.mubr.f32.gmra.mrb[0].mxu0 %v681
  %v812 = vpop.f32.mrb[0].mxu0
  %v813 = vadd.f32 0.0, %v812
  %v814 = vpop.f32.mrb[0].mxu0
  %815 = vmatprep.mubr.f32.mxu0 0.0
  %816 = vmatmul.mubr.f32.gmra.mrb[0].mxu0 %v684
  %v817 = vpop.f32.mrb[0].mxu0
  %v818 = vadd.f32 0.0, %v817
  %v819 = vpop.f32.mrb[0].mxu0
  %820 = vmatprep.mubr.f32.mxu0 0.0
  %821 = vmatmul.mubr.f32.gmra.mrb[0].mxu0 %v687
  %v822 = vpop.f32.mrb[0].mxu0
  %v823 = vadd.f32 0.0, %v822
  %v824 = vpop.f32.mrb[0].mxu0
  %825 = vmatprep.mubr.f32.mxu0 0.0
  %826 = vmatmul.mubr.f32.gmra.mrb[0].mxu0 %v690
  %v827 = vpop.f32.mrb[0].mxu0
  %v828 = vadd.f32 0.0, %v827
  %v829 = vpop.f32.mrb[0].mxu0
  %830 = vmatprep.mubr.f32.mxu0 0.0
  %831 = vmatmul.mubr.f32.gmra.mrb[0].mxu0 %v693
  %v832 = vpop.f32.mrb[0].mxu0
  %v833 = vadd.f32 0.0, %v832
  %v834 = vpop.f32.mrb[0].mxu0
  %835 = vmatprep.mubr.f32.mxu0 0.0
  %836 = vmatmul.mubr.f32.gmra.mrb[0].mxu0 %v696
  %v837 = vpop.f32.mrb[0].mxu0
  %v838 = vadd.f32 0.0, %v837
  %v839 = vpop.f32.mrb[0].mxu0
  %840 = vmatprep.mubr.f32.mxu0 0.0
  %841 = vmatmul.mubr.f32.gmra.mrb[0].mxu0 %v699
  %v842 = vpop.f32.mrb[0].mxu0
  %v843 = vadd.f32 0.0, %v842
  %v844 = vpop.f32.mrb[0].mxu0
  %845 = vdwg.mxu0
  %846 = vst.msk [vmem:[%s3] sm:$0xff] %vm41, %v768
  %847 = vst.msk [vmem:[%s3 + $0x8] sm:$0xff] %vm41, %v773
  %848 = vst.msk [vmem:[%s3 + $0x10] sm:$0xff] %vm41, %v778
  %849 = vst.msk [vmem:[%s3 + $0x18] sm:$0xff] %vm41, %v783
  %850 = vst.msk [vmem:[%s3 + $0x20] sm:$0xff] %vm41, %v788
  %851 = vst.msk [vmem:[%s3 + $0x28] sm:$0xff] %vm41, %v793
  %852 = vst.msk [vmem:[%s3 + $0x30] sm:$0xff] %vm41, %v798
  %853 = vst.msk [vmem:[%s3 + $0x38] sm:$0xff] %vm41, %v803
  %854 = vst.msk [vmem:[%s3 + $0x40] sm:$0xff] %vm41, %v808
  %855 = vst.msk [vmem:[%s3 + $0x48] sm:$0xff] %vm41, %v813
  %856 = vst.msk [vmem:[%s3 + $0x50] sm:$0xff] %vm41, %v818
  %857 = vst.msk [vmem:[%s3 + $0x58] sm:$0xff] %vm41, %v823
  %858 = vst.msk [vmem:[%s3 + $0x60] sm:$0xff] %vm41, %v828
  %859 = vst.msk [vmem:[%s3 + $0x68] sm:$0xff] %vm41, %v833
  %860 = vst.msk [vmem:[%s3 + $0x70] sm:$0xff] %vm41, %v838
  %861 = vst.msk [vmem:[%s3 + $0x78] sm:$0xff] %vm41, %v843
  %862 = vst.msk [vmem:[%s4] sm:$0xff] %vm284, %v637
  %863 = vst.msk [vmem:[%s4 + $0x8] sm:$0xff] %vm284, %v638
  %864 = vst.msk [vmem:[%s4 + $0x10] sm:$0xff] %vm284, %v639
  %865 = vst.msk [vmem:[%s4 + $0x18] sm:$0xff] %vm284, %v640
  %866 = vst.msk [vmem:[%s4 + $0x20] sm:$0xff] %vm284, %v641
  %867 = vst.msk [vmem:[%s4 + $0x28] sm:$0xff] %vm284, %v642
  %868 = vst.msk [vmem:[%s4 + $0x30] sm:$0xff] %vm284, %v643
  %869 = vst.msk [vmem:[%s4 + $0x38] sm:$0xff] %vm284, %v644
  %870 = vst.msk [vmem:[%s4 + $0x40] sm:$0xff] %vm284, %v645
  %871 = vst.msk [vmem:[%s4 + $0x48] sm:$0xff] %vm284, %v646
  %872 = vst.msk [vmem:[%s4 + $0x50] sm:$0xff] %vm284, %v647
  %873 = vst.msk [vmem:[%s4 + $0x58] sm:$0xff] %vm284, %v648
  %874 = vst.msk [vmem:[%s4 + $0x60] sm:$0xff] %vm284, %v649
  %875 = vst.msk [vmem:[%s4 + $0x68] sm:$0xff] %vm284, %v650
  %876 = vst.msk [vmem:[%s4 + $0x70] sm:$0xff] %vm284, %v651
  %877 = vst.msk [vmem:[%s4 + $0x78] sm:$0xff] %vm284, %v652
  %v878 = vsel %vm284, %v637, 0.0
  %v879 = vsel %vm284, %v638, 0.0
  %v880 = vadd.f32 %v878, %v879
  %v881 = vsel %vm284, %v639, 0.0
  %v882 = vadd.f32 %v880, %v881
  %v883 = vsel %vm284, %v640, 0.0
  %v884 = vadd.f32 %v882, %v883
  %v885 = vsel %vm284, %v641, 0.0
  %v886 = vadd.f32 %v884, %v885
  %v887 = vsel %vm284, %v642, 0.0
  %v888 = vadd.f32 %v886, %v887
  %v889 = vsel %vm284, %v643, 0.0
  %v890 = vadd.f32 %v888, %v889
  %v891 = vsel %vm284, %v644, 0.0
  %v892 = vadd.f32 %v890, %v891
  %v893 = vsel %vm284, %v645, 0.0
  %v894 = vadd.f32 %v892, %v893
  %v895 = vsel %vm284, %v646, 0.0
  %v896 = vadd.f32 %v894, %v895
  %v897 = vsel %vm284, %v647, 0.0
  %v898 = vadd.f32 %v896, %v897
  %v899 = vsel %vm284, %v648, 0.0
  %v900 = vadd.f32 %v898, %v899
  %v901 = vsel %vm284, %v649, 0.0
  %v902 = vadd.f32 %v900, %v901
  %v903 = vsel %vm284, %v650, 0.0
  %v904 = vadd.f32 %v902, %v903
  %v905 = vsel %vm284, %v651, 0.0
  %v906 = vadd.f32 %v904, %v905
  %v907 = vsel %vm284, %v652, 0.0
  %v908 = vadd.f32 %v906, %v907
  %v909 = vrot.slane %v908, 4
  %v910 = vadd.f32 %v908, %v909
  %v911 = vrot.slane %v910, 2
  %v912 = vadd.f32 %v910, %v911
  %v913 = vrot.slane %v912, 1
  %v914 = vadd.f32 %v912, %v913
  %vm915 = vcmask 516096
  %916 = vst.msk [vmem:[%s5] sm:$0x1] %vm915, %v914
  // Predicated region
  $region14: #{vector_quantizer_ema_forward.1} parent=0 // pred_check
    _
  $region15: #{vector_quantizer_ema_forward.1} parent=0 // pred_check_branch
    %918 = sbr.rel (0) target = $region17
  $region16: #{vector_quantizer_ema_forward.1} parent=0 // pred_region
    _
  $region17: #{vector_quantizer_ema_forward.1} parent=0 // pred_fallthru
    _
  // Predicated region
  $region18: #{vector_quantizer_ema_forward.1} parent=0 // pred_check
    _
  $region19: #{vector_quantizer_ema_forward.1} parent=0 // pred_check_branch
    %920 = sbr.rel (0) target = $region21
  $region20: #{vector_quantizer_ema_forward.1} parent=0 // pred_region
    _
  $region21: #{vector_quantizer_ema_forward.1} parent=0 // pred_fallthru
    _
  // Predicated region
  $region22: #{vector_quantizer_ema_forward.1} parent=0 // pred_check
    _
  $region23: #{vector_quantizer_ema_forward.1} parent=0 // pred_check_branch
    %922 = sbr.rel (0) target = $region25
  $region24: #{vector_quantizer_ema_forward.1} parent=0 // pred_region
    _
  $region25: #{vector_quantizer_ema_forward.1} parent=0 // pred_fallthru
    _
  // Predicated region
  $region26: #{vector_quantizer_ema_forward.1} parent=0 // pred_check
    _
  $region27: #{vector_quantizer_ema_forward.1} parent=0 // pred_check_branch
    %924 = sbr.rel (0) target = $region29
  $region28: #{vector_quantizer_ema_forward.1} parent=0 // pred_region
    _
  $region29: #{vector_quantizer_ema_forward.1} parent=0 // pred_fallthru
    _
  // Predicated region
  $region30: #{vector_quantizer_ema_forward.1} parent=0 // pred_check
    _
  $region31: #{vector_quantizer_ema_forward.1} parent=0 // pred_check_branch
    %926 = sbr.rel (0) target = $region33
  $region32: #{vector_quantizer_ema_forward.1} parent=0 // pred_region
    _
  $region33: #{vector_quantizer_ema_forward.1} parent=0 // pred_fallthru
    _
  // Predicated region
  $region34: #{vector_quantizer_ema_forward.1} parent=0 // pred_check
    _
  $region35: #{vector_quantizer_ema_forward.1} parent=0 // pred_check_branch
    %928 = sbr.rel (0) target = $region37
  $region36: #{vector_quantizer_ema_forward.1} parent=0 // pred_region
    _
  $region37: #{vector_quantizer_ema_forward.1} parent=0 // pred_fallthru
    _

</llo_original>
